<compile_context>
chip_gen: v6e
topology: v6e:2x2x1
jax: 0.10.0
libtpu: 0.0.40
codegen_flags: <defaults>
</compile_context>

<pallas_src>
import jax
import jax.numpy as jnp
from jax.experimental import pallas as pl
from jax.experimental.pallas import tpu as pltpu


def nnstack_kernel(val_ref, packed_ref, out_ref):
    """Compute stg (transposed) and rt in one fused output.

    val_ref    : (t, B, m)       full value stack Val = cat(prev_Val, vt)
    packed_ref : (B, t_1 + 2)    columns = [prev_stg.T | dt | ut]
    out_ref    : (B, t + m)      columns = [stg.T | rt]
    """
    t, B, m = val_ref.shape
    t_1 = t - 1

    packed = packed_ref[...]                       # single VMEM load
    dt = packed[:, t_1:t_1 + 1]                    # (B, 1)
    ut = packed[:, t_1 + 1:t_1 + 2]                # (B, 1)

    # --- pop-strength recurrence (sequential, tiny (B,1) ops) ---
    # stg[t-1] = dt ; for i = t_1-1 .. 0:
    #   stg[i] = clamp(prev_stg[i] - clamp(ut, max=0), max=0); ut -= stg[i]
    stg_cols = [None] * t
    stg_cols[t - 1] = dt
    u = ut
    for i in range(t_1 - 1, -1, -1):
        temp = packed[:, i:i + 1] - jnp.minimum(u, 0.0)
        s = jnp.minimum(temp, 0.0)
        stg_cols[i] = s
        u = u - s

    # --- read-coefficient recurrence (still on (B,1) only) ---
    # read starts at 1; coef[i] = min(stg[i], clamp(read, max=0)); read -= stg[i]
    coef_cols = [None] * t
    read = jnp.ones((B, 1), dtype=jnp.float32)
    for i in range(t - 1, -1, -1):
        coef_cols[i] = jnp.minimum(stg_cols[i], jnp.minimum(read, 0.0))
        read = read - stg_cols[i]

    # --- wide weighted sum: rt = sum_i coef[i] * Val[i] ---
    # All (B, m) products are independent now; only the adds chain (t terms).
    rt = coef_cols[0] * val_ref[0]
    for i in range(1, t):
        rt = rt + coef_cols[i] * val_ref[i]

    # Single coalesced store of both outputs.
    out_ref[...] = jnp.concatenate(stg_cols + [rt], axis=1).astype(out_ref.dtype)


def nnstack_pallas(prev_Val, prev_stg, dt, ut, vt):
    t_1, B, m = prev_Val.shape
    t = t_1 + 1
    f32 = jnp.float32

    # Val = cat(prev_Val, vt): pure memcpy, kept out of the kernel so the
    # stack is read exactly once by the pallas_call and never written back.
    Val = jnp.concatenate([prev_Val.astype(f32), vt.astype(f32)], axis=0)

    # Pack the small per-batch operands into one lane-contiguous slab so the
    # kernel has exactly 2 input DMA descriptors and 1 output descriptor.
    packed = jnp.concatenate(
        [prev_stg.astype(f32).T,            # (B, t_1)
         dt.astype(f32).reshape(B, 1),      # (B, 1)
         ut.astype(f32).reshape(B, 1)],     # (B, 1)
        axis=1)

    vmem = pl.BlockSpec(memory_space=pltpu.MemorySpace.VMEM)
    out = pl.pallas_call(
        nnstack_kernel,
        out_shape=jax.ShapeDtypeStruct((B, t + m), f32),
        in_specs=[vmem, vmem],
        out_specs=vmem,
    )(Val, packed)

    stg = out[:, :t].T     # back to torch layout (t, B)
    rt = out[:, t:]        # (B, m)
    return (Val, stg), rt


def nnstack_ref(prev_Val, prev_stg, dt, ut, vt):
    """Pure-JAX reference mirroring the PyTorch forward exactly."""
    t_1, B, m = prev_Val.shape
    t = t_1 + 1
    Val = jnp.concatenate([prev_Val, vt], axis=0)
    stg_rows = [None] * t
    stg_rows[t - 1] = dt
    u = ut
    for i in range(t_1 - 1, -1, -1):
        temp = prev_stg[i] - jnp.minimum(u, 0.0)     # clamp(ut, max=0)
        stg_rows[i] = jnp.minimum(temp, 0.0)         # clamp(temp, max=0)
        u = u - stg_rows[i]
    stg = jnp.stack(stg_rows, axis=0)
    rt = jnp.zeros((B, m), dtype=jnp.float32)
    read = jnp.ones((B,), dtype=jnp.float32)
    for i in range(t - 1, -1, -1):
        temp = jnp.minimum(read, 0.0)
        coef = jnp.minimum(stg[i], temp)
        rt = rt + coef[:, None] * Val[i]
        read = read - stg[i]
    return (Val, stg), rt


if __name__ == "__main__":
    # Small synthetic shapes: t_1 = 8 previous timesteps, batch B = 4, m = 32.
    t_1, B, m = 8, 4, 32
    key = jax.random.PRNGKey(0)
    k1, k2, k3, k4, k5 = jax.random.split(key, 5)
    prev_Val = jax.random.normal(k1, (t_1, B, m), dtype=jnp.float32)
    prev_stg = jax.random.normal(k2, (t_1, B), dtype=jnp.float32)
    dt = jax.random.uniform(k3, (B,), dtype=jnp.float32)
    ut = jax.random.normal(k4, (B,), dtype=jnp.float32)
    vt = jax.random.normal(k5, (1, B, m), dtype=jnp.float32)

    fwd = jax.jit(nnstack_pallas)
    (val, stg), rt = fwd(prev_Val, prev_stg, dt, ut, vt)
    jax.block_until_ready((val, stg, rt))

    (val_r, stg_r), rt_r = nnstack_ref(prev_Val, prev_stg, dt, ut, vt)
    assert val.shape == (t_1 + 1, B, m)
    assert stg.shape == (t_1 + 1, B)
    assert rt.shape == (B, m)
    assert jnp.allclose(val, val_r, atol=1e-5, rtol=1e-5)
    assert jnp.allclose(stg, stg_r, atol=1e-5, rtol=1e-5)
    assert jnp.allclose(rt, rt_r, atol=1e-5, rtol=1e-5)
    print("KERNEL_OK")
</pallas_src>

<mosaic_0001>
module attributes {stable_mosaic.version = 11 : i64} {
  func.func @nnstack_kernel(%arg0: memref<9x4x32xf32, #tpu.memory_space<vmem>>, %arg1: memref<4x10xf32, #tpu.memory_space<vmem>>, %arg2: memref<4x41xf32, #tpu.memory_space<vmem>>) attributes {dimension_semantics = [], scalar_prefetch = 0 : i64, scratch_operands = 0 : i64, tpu.core_type = #tpu.core_type<tc>} {
    %c0 = arith.constant 0 : index
    %c0_0 = arith.constant 0 : index
    %0 = vector.load %arg1[%c0, %c0_0] : memref<4x10xf32, #tpu.memory_space<vmem>>, vector<4x10xf32>
    %1 = vector.extract_strided_slice %0 {offsets = [0, 8], sizes = [4, 1], strides = [1, 1]} : vector<4x10xf32> to vector<4x1xf32>
    %2 = vector.extract_strided_slice %0 {offsets = [0, 9], sizes = [4, 1], strides = [1, 1]} : vector<4x10xf32> to vector<4x1xf32>
    %3 = vector.extract_strided_slice %0 {offsets = [0, 7], sizes = [4, 1], strides = [1, 1]} : vector<4x10xf32> to vector<4x1xf32>
    %cst = arith.constant 0.000000e+00 : f32
    %4 = vector.broadcast %cst : f32 to vector<4x1xf32>
    %5 = arith.minimumf %2, %4 : vector<4x1xf32>
    %6 = arith.subf %3, %5 : vector<4x1xf32>
    %cst_1 = arith.constant 0.000000e+00 : f32
    %7 = vector.broadcast %cst_1 : f32 to vector<4x1xf32>
    %8 = arith.minimumf %6, %7 : vector<4x1xf32>
    %9 = arith.subf %2, %8 : vector<4x1xf32>
    %10 = vector.extract_strided_slice %0 {offsets = [0, 6], sizes = [4, 1], strides = [1, 1]} : vector<4x10xf32> to vector<4x1xf32>
    %cst_2 = arith.constant 0.000000e+00 : f32
    %11 = vector.broadcast %cst_2 : f32 to vector<4x1xf32>
    %12 = arith.minimumf %9, %11 : vector<4x1xf32>
    %13 = arith.subf %10, %12 : vector<4x1xf32>
    %cst_3 = arith.constant 0.000000e+00 : f32
    %14 = vector.broadcast %cst_3 : f32 to vector<4x1xf32>
    %15 = arith.minimumf %13, %14 : vector<4x1xf32>
    %16 = arith.subf %9, %15 : vector<4x1xf32>
    %17 = vector.extract_strided_slice %0 {offsets = [0, 5], sizes = [4, 1], strides = [1, 1]} : vector<4x10xf32> to vector<4x1xf32>
    %cst_4 = arith.constant 0.000000e+00 : f32
    %18 = vector.broadcast %cst_4 : f32 to vector<4x1xf32>
    %19 = arith.minimumf %16, %18 : vector<4x1xf32>
    %20 = arith.subf %17, %19 : vector<4x1xf32>
    %cst_5 = arith.constant 0.000000e+00 : f32
    %21 = vector.broadcast %cst_5 : f32 to vector<4x1xf32>
    %22 = arith.minimumf %20, %21 : vector<4x1xf32>
    %23 = arith.subf %16, %22 : vector<4x1xf32>
    %24 = vector.extract_strided_slice %0 {offsets = [0, 4], sizes = [4, 1], strides = [1, 1]} : vector<4x10xf32> to vector<4x1xf32>
    %cst_6 = arith.constant 0.000000e+00 : f32
    %25 = vector.broadcast %cst_6 : f32 to vector<4x1xf32>
    %26 = arith.minimumf %23, %25 : vector<4x1xf32>
    %27 = arith.subf %24, %26 : vector<4x1xf32>
    %cst_7 = arith.constant 0.000000e+00 : f32
    %28 = vector.broadcast %cst_7 : f32 to vector<4x1xf32>
    %29 = arith.minimumf %27, %28 : vector<4x1xf32>
    %30 = arith.subf %23, %29 : vector<4x1xf32>
    %31 = vector.extract_strided_slice %0 {offsets = [0, 3], sizes = [4, 1], strides = [1, 1]} : vector<4x10xf32> to vector<4x1xf32>
    %cst_8 = arith.constant 0.000000e+00 : f32
    %32 = vector.broadcast %cst_8 : f32 to vector<4x1xf32>
    %33 = arith.minimumf %30, %32 : vector<4x1xf32>
    %34 = arith.subf %31, %33 : vector<4x1xf32>
    %cst_9 = arith.constant 0.000000e+00 : f32
    %35 = vector.broadcast %cst_9 : f32 to vector<4x1xf32>
    %36 = arith.minimumf %34, %35 : vector<4x1xf32>
    %37 = arith.subf %30, %36 : vector<4x1xf32>
    %38 = vector.extract_strided_slice %0 {offsets = [0, 2], sizes = [4, 1], strides = [1, 1]} : vector<4x10xf32> to vector<4x1xf32>
    %cst_10 = arith.constant 0.000000e+00 : f32
    %39 = vector.broadcast %cst_10 : f32 to vector<4x1xf32>
    %40 = arith.minimumf %37, %39 : vector<4x1xf32>
    %41 = arith.subf %38, %40 : vector<4x1xf32>
    %cst_11 = arith.constant 0.000000e+00 : f32
    %42 = vector.broadcast %cst_11 : f32 to vector<4x1xf32>
    %43 = arith.minimumf %41, %42 : vector<4x1xf32>
    %44 = arith.subf %37, %43 : vector<4x1xf32>
    %45 = vector.extract_strided_slice %0 {offsets = [0, 1], sizes = [4, 1], strides = [1, 1]} : vector<4x10xf32> to vector<4x1xf32>
    %cst_12 = arith.constant 0.000000e+00 : f32
    %46 = vector.broadcast %cst_12 : f32 to vector<4x1xf32>
    %47 = arith.minimumf %44, %46 : vector<4x1xf32>
    %48 = arith.subf %45, %47 : vector<4x1xf32>
    %cst_13 = arith.constant 0.000000e+00 : f32
    %49 = vector.broadcast %cst_13 : f32 to vector<4x1xf32>
    %50 = arith.minimumf %48, %49 : vector<4x1xf32>
    %51 = arith.subf %44, %50 : vector<4x1xf32>
    %52 = vector.extract_strided_slice %0 {offsets = [0, 0], sizes = [4, 1], strides = [1, 1]} : vector<4x10xf32> to vector<4x1xf32>
    %cst_14 = arith.constant 0.000000e+00 : f32
    %53 = vector.broadcast %cst_14 : f32 to vector<4x1xf32>
    %54 = arith.minimumf %51, %53 : vector<4x1xf32>
    %55 = arith.subf %52, %54 : vector<4x1xf32>
    %cst_15 = arith.constant 0.000000e+00 : f32
    %56 = vector.broadcast %cst_15 : f32 to vector<4x1xf32>
    %57 = arith.minimumf %55, %56 : vector<4x1xf32>
    %cst_16 = arith.constant 1.000000e+00 : f32
    %58 = vector.broadcast %cst_16 : f32 to vector<4x1xf32>
    %cst_17 = arith.constant 0.000000e+00 : f32
    %59 = vector.broadcast %cst_17 : f32 to vector<4x1xf32>
    %60 = arith.minimumf %58, %59 : vector<4x1xf32>
    %61 = arith.minimumf %1, %60 : vector<4x1xf32>
    %62 = arith.subf %58, %1 : vector<4x1xf32>
    %cst_18 = arith.constant 0.000000e+00 : f32
    %63 = vector.broadcast %cst_18 : f32 to vector<4x1xf32>
    %64 = arith.minimumf %62, %63 : vector<4x1xf32>
    %65 = arith.minimumf %8, %64 : vector<4x1xf32>
    %66 = arith.subf %62, %8 : vector<4x1xf32>
    %cst_19 = arith.constant 0.000000e+00 : f32
    %67 = vector.broadcast %cst_19 : f32 to vector<4x1xf32>
    %68 = arith.minimumf %66, %67 : vector<4x1xf32>
    %69 = arith.minimumf %15, %68 : vector<4x1xf32>
    %70 = arith.subf %66, %15 : vector<4x1xf32>
    %cst_20 = arith.constant 0.000000e+00 : f32
    %71 = vector.broadcast %cst_20 : f32 to vector<4x1xf32>
    %72 = arith.minimumf %70, %71 : vector<4x1xf32>
    %73 = arith.minimumf %22, %72 : vector<4x1xf32>
    %74 = arith.subf %70, %22 : vector<4x1xf32>
    %cst_21 = arith.constant 0.000000e+00 : f32
    %75 = vector.broadcast %cst_21 : f32 to vector<4x1xf32>
    %76 = arith.minimumf %74, %75 : vector<4x1xf32>
    %77 = arith.minimumf %29, %76 : vector<4x1xf32>
    %78 = arith.subf %74, %29 : vector<4x1xf32>
    %cst_22 = arith.constant 0.000000e+00 : f32
    %79 = vector.broadcast %cst_22 : f32 to vector<4x1xf32>
    %80 = arith.minimumf %78, %79 : vector<4x1xf32>
    %81 = arith.minimumf %36, %80 : vector<4x1xf32>
    %82 = arith.subf %78, %36 : vector<4x1xf32>
    %cst_23 = arith.constant 0.000000e+00 : f32
    %83 = vector.broadcast %cst_23 : f32 to vector<4x1xf32>
    %84 = arith.minimumf %82, %83 : vector<4x1xf32>
    %85 = arith.minimumf %43, %84 : vector<4x1xf32>
    %86 = arith.subf %82, %43 : vector<4x1xf32>
    %cst_24 = arith.constant 0.000000e+00 : f32
    %87 = vector.broadcast %cst_24 : f32 to vector<4x1xf32>
    %88 = arith.minimumf %86, %87 : vector<4x1xf32>
    %89 = arith.minimumf %50, %88 : vector<4x1xf32>
    %90 = arith.subf %86, %50 : vector<4x1xf32>
    %cst_25 = arith.constant 0.000000e+00 : f32
    %91 = vector.broadcast %cst_25 : f32 to vector<4x1xf32>
    %92 = arith.minimumf %90, %91 : vector<4x1xf32>
    %93 = arith.minimumf %57, %92 : vector<4x1xf32>
    %c0_26 = arith.constant 0 : index
    %c0_27 = arith.constant 0 : index
    %c0_28 = arith.constant 0 : index
    %94 = vector.load %arg0[%c0_26, %c0_27, %c0_28] : memref<9x4x32xf32, #tpu.memory_space<vmem>>, vector<1x4x32xf32>
    %95 = vector.shape_cast %94 : vector<1x4x32xf32> to vector<4x32xf32>
    %96 = vector.broadcast %93 : vector<4x1xf32> to vector<4x32xf32>
    %97 = arith.mulf %96, %95 : vector<4x32xf32>
    %c1 = arith.constant 1 : index
    %c0_29 = arith.constant 0 : index
    %c0_30 = arith.constant 0 : index
    %98 = vector.load %arg0[%c1, %c0_29, %c0_30] : memref<9x4x32xf32, #tpu.memory_space<vmem>>, vector<1x4x32xf32>
    %99 = vector.shape_cast %98 : vector<1x4x32xf32> to vector<4x32xf32>
    %100 = vector.broadcast %89 : vector<4x1xf32> to vector<4x32xf32>
    %101 = arith.mulf %100, %99 : vector<4x32xf32>
    %102 = arith.addf %97, %101 : vector<4x32xf32>
    %c2 = arith.constant 2 : index
    %c0_31 = arith.constant 0 : index
    %c0_32 = arith.constant 0 : index
    %103 = vector.load %arg0[%c2, %c0_31, %c0_32] : memref<9x4x32xf32, #tpu.memory_space<vmem>>, vector<1x4x32xf32>
    %104 = vector.shape_cast %103 : vector<1x4x32xf32> to vector<4x32xf32>
    %105 = vector.broadcast %85 : vector<4x1xf32> to vector<4x32xf32>
    %106 = arith.mulf %105, %104 : vector<4x32xf32>
    %107 = arith.addf %102, %106 : vector<4x32xf32>
    %c3 = arith.constant 3 : index
    %c0_33 = arith.constant 0 : index
    %c0_34 = arith.constant 0 : index
    %108 = vector.load %arg0[%c3, %c0_33, %c0_34] : memref<9x4x32xf32, #tpu.memory_space<vmem>>, vector<1x4x32xf32>
    %109 = vector.shape_cast %108 : vector<1x4x32xf32> to vector<4x32xf32>
    %110 = vector.broadcast %81 : vector<4x1xf32> to vector<4x32xf32>
    %111 = arith.mulf %110, %109 : vector<4x32xf32>
    %112 = arith.addf %107, %111 : vector<4x32xf32>
    %c4 = arith.constant 4 : index
    %c0_35 = arith.constant 0 : index
    %c0_36 = arith.constant 0 : index
    %113 = vector.load %arg0[%c4, %c0_35, %c0_36] : memref<9x4x32xf32, #tpu.memory_space<vmem>>, vector<1x4x32xf32>
    %114 = vector.shape_cast %113 : vector<1x4x32xf32> to vector<4x32xf32>
    %115 = vector.broadcast %77 : vector<4x1xf32> to vector<4x32xf32>
    %116 = arith.mulf %115, %114 : vector<4x32xf32>
    %117 = arith.addf %112, %116 : vector<4x32xf32>
    %c5 = arith.constant 5 : index
    %c0_37 = arith.constant 0 : index
    %c0_38 = arith.constant 0 : index
    %118 = vector.load %arg0[%c5, %c0_37, %c0_38] : memref<9x4x32xf32, #tpu.memory_space<vmem>>, vector<1x4x32xf32>
    %119 = vector.shape_cast %118 : vector<1x4x32xf32> to vector<4x32xf32>
    %120 = vector.broadcast %73 : vector<4x1xf32> to vector<4x32xf32>
    %121 = arith.mulf %120, %119 : vector<4x32xf32>
    %122 = arith.addf %117, %121 : vector<4x32xf32>
    %c6 = arith.constant 6 : index
    %c0_39 = arith.constant 0 : index
    %c0_40 = arith.constant 0 : index
    %123 = vector.load %arg0[%c6, %c0_39, %c0_40] : memref<9x4x32xf32, #tpu.memory_space<vmem>>, vector<1x4x32xf32>
    %124 = vector.shape_cast %123 : vector<1x4x32xf32> to vector<4x32xf32>
    %125 = vector.broadcast %69 : vector<4x1xf32> to vector<4x32xf32>
    %126 = arith.mulf %125, %124 : vector<4x32xf32>
    %127 = arith.addf %122, %126 : vector<4x32xf32>
    %c7 = arith.constant 7 : index
    %c0_41 = arith.constant 0 : index
    %c0_42 = arith.constant 0 : index
    %128 = vector.load %arg0[%c7, %c0_41, %c0_42] : memref<9x4x32xf32, #tpu.memory_space<vmem>>, vector<1x4x32xf32>
    %129 = vector.shape_cast %128 : vector<1x4x32xf32> to vector<4x32xf32>
    %130 = vector.broadcast %65 : vector<4x1xf32> to vector<4x32xf32>
    %131 = arith.mulf %130, %129 : vector<4x32xf32>
    %132 = arith.addf %127, %131 : vector<4x32xf32>
    %c8 = arith.constant 8 : index
    %c0_43 = arith.constant 0 : index
    %c0_44 = arith.constant 0 : index
    %133 = vector.load %arg0[%c8, %c0_43, %c0_44] : memref<9x4x32xf32, #tpu.memory_space<vmem>>, vector<1x4x32xf32>
    %134 = vector.shape_cast %133 : vector<1x4x32xf32> to vector<4x32xf32>
    %135 = vector.broadcast %61 : vector<4x1xf32> to vector<4x32xf32>
    %136 = arith.mulf %135, %134 : vector<4x32xf32>
    %137 = arith.addf %132, %136 : vector<4x32xf32>
    %138 = tpu.concatenate %57, %50, %43, %36, %29, %22, %15, %8, %1, %137 in 1 : vector<4x1xf32>, vector<4x1xf32>, vector<4x1xf32>, vector<4x1xf32>, vector<4x1xf32>, vector<4x1xf32>, vector<4x1xf32>, vector<4x1xf32>, vector<4x1xf32>, vector<4x32xf32> -> vector<4x41xf32>
    %c0_45 = arith.constant 0 : index
    %c0_46 = arith.constant 0 : index
    %139 = vector.load %arg2[%c0_45, %c0_46] : memref<4x41xf32, #tpu.memory_space<vmem>>, vector<4x41xf32>
    tpu.vector_store %arg2[%c0_45, %c0_46], %138 {strides = array<i32>} : memref<4x41xf32, #tpu.memory_space<vmem>>, vector<4x41xf32>,
    return
  }
}

</mosaic_0001>

<llo_original>
// kernel: nnstack_pallas.1
$region0: #{nnstack_pallas.1}
  #allocation0 [shape = 'u32[]', space=smem, size = 0x4, offset = 0x4, fixed_abs, tag = 'smem constant byte address 0x4 - core index']
  #allocation1 [shape = 'u32[144,128]{1,0:T(1,128)}', space=vmem, size = 0x12000, scoped, tag = 'internal scratch']
  %s0 = inlined_call_operand.vmem [shape: f32[9,4,32], index: 0, kind: input, shape index: {}]
  %s1 = inlined_call_operand.vmem [shape: f32[4,10], index: 1, kind: input, shape index: {}]
  %s2 = inlined_call_operand.vmem [shape: f32[4,41], index: 2, kind: output, shape index: {}]
  %s3 = sld [smem:[#allocation0]]
  $region18: #{nnstack_pallas.1} parent=0
    _
  %s5 = ssub.s32 1, %s3
  %s6 = scalar_select 0, %s5, %s3
  // Predicated region
  $region2: #{nnstack_pallas.1} parent=0 // pred_check
    _
  $region3: #{nnstack_pallas.1} parent=0 // pred_check_branch
    %8 = sbr.rel (0) target = $region5
  $region4: #{nnstack_pallas.1} parent=0 // pred_region
    _
  $region5: #{nnstack_pallas.1} parent=0 // pred_fallthru
    _
  // Predicated region
  $region6: #{nnstack_pallas.1} parent=0 // pred_check
    _
  $region7: #{nnstack_pallas.1} parent=0 // pred_check_branch
    %10 = sbr.rel (0) target = $region9
  $region8: #{nnstack_pallas.1} parent=0 // pred_region
    _
  $region9: #{nnstack_pallas.1} parent=0 // pred_fallthru
    _
  %v11 = vld [vmem:[%s1] sm:$0xf]
  %v12 = vmin.f32 %v11, 0.0
  %14 = vrot.lane.b32.xlu0 %v12, 126
  %v15 = vpop.permute.xlu0 %14
  %v17 = vsub.f32 %v11, %v15
  %v18 = vmin.f32 %v17, 0.0
  %20 = vrot.lane.b32.xlu0 %v18, 2
  %v21 = vpop.permute.xlu0 %20
  %v23 = vsub.f32 %v11, %v21
  %v24 = vmin.f32 %v23, 0.0
  %26 = vrot.lane.b32.xlu0 %v24, 125
  %v27 = vpop.permute.xlu0 %26
  %v29 = vsub.f32 %v11, %v27
  %v30 = vmin.f32 %v29, 0.0
  %32 = vrot.lane.b32.xlu0 %v30, 3
  %v33 = vpop.permute.xlu0 %32
  %v35 = vsub.f32 %v23, %v33
  %v36 = vmin.f32 %v35, 0.0
  %38 = vrot.lane.b32.xlu0 %v36, 124
  %v39 = vpop.permute.xlu0 %38
  %v41 = vsub.f32 %v11, %v39
  %v42 = vmin.f32 %v41, 0.0
  %44 = vrot.lane.b32.xlu0 %v42, 4
  %v45 = vpop.permute.xlu0 %44
  %v47 = vsub.f32 %v35, %v45
  %v48 = vmin.f32 %v47, 0.0
  %50 = vrot.lane.b32.xlu0 %v48, 123
  %v51 = vpop.permute.xlu0 %50
  %v53 = vsub.f32 %v11, %v51
  %v54 = vmin.f32 %v53, 0.0
  %56 = vrot.lane.b32.xlu0 %v54, 5
  %v57 = vpop.permute.xlu0 %56
  %v59 = vsub.f32 %v47, %v57
  %v60 = vmin.f32 %v59, 0.0
  %62 = vrot.lane.b32.xlu0 %v60, 122
  %v63 = vpop.permute.xlu0 %62
  %v65 = vsub.f32 %v11, %v63
  %v66 = vmin.f32 %v65, 0.0
  %68 = vrot.lane.b32.xlu0 %v66, 6
  %v69 = vpop.permute.xlu0 %68
  %v71 = vsub.f32 %v59, %v69
  %v72 = vmin.f32 %v71, 0.0
  %74 = vrot.lane.b32.xlu0 %v72, 121
  %v75 = vpop.permute.xlu0 %74
  %v77 = vsub.f32 %v11, %v75
  %v78 = vmin.f32 %v77, 0.0
  %80 = vrot.lane.b32.xlu0 %v78, 7
  %v81 = vpop.permute.xlu0 %80
  %v83 = vsub.f32 %v71, %v81
  %v84 = vmin.f32 %v83, 0.0
  %86 = vrot.lane.b32.xlu0 %v84, 120
  %v87 = vpop.permute.xlu0 %86
  %v89 = vsub.f32 %v11, %v87
  %v90 = vmin.f32 %v89, 0.0
  %92 = vrot.lane.b32.xlu0 %v90, 8
  %v93 = vpop.permute.xlu0 %92
  %v95 = vsub.f32 %v83, %v93
  %v96 = vmin.f32 %v95, 0.0
  %98 = vrot.lane.b32.xlu0 %v96, 119
  %v99 = vpop.permute.xlu0 %98
  %v101 = vsub.f32 %v11, %v99
  %v102 = vmin.f32 %v101, 0.0
  %v103 = vsub.f32 1.0, %v11
  %v104 = vmin.f32 %v103, 0.0
  %106 = vrot.lane.b32.xlu0 %v104, 127
  %v107 = vpop.permute.xlu0 %106
  %v109 = vmin.f32 %v18, %v107
  %110 = vrot.lane.b32.xlu0 %v18, 1
  %v111 = vpop.permute.xlu0 %110
  %v113 = vsub.f32 %v103, %v111
  %v114 = vmin.f32 %v113, 0.0
  %116 = vrot.lane.b32.xlu0 %v114, 126
  %v117 = vpop.permute.xlu0 %116
  %v119 = vmin.f32 %v30, %v117
  %120 = vrot.lane.b32.xlu0 %v30, 2
  %v121 = vpop.permute.xlu0 %120
  %v123 = vsub.f32 %v113, %v121
  %v124 = vmin.f32 %v123, 0.0
  %126 = vrot.lane.b32.xlu0 %v124, 125
  %v127 = vpop.permute.xlu0 %126
  %v129 = vmin.f32 %v42, %v127
  %130 = vrot.lane.b32.xlu0 %v42, 3
  %v131 = vpop.permute.xlu0 %130
  %v133 = vsub.f32 %v123, %v131
  %v134 = vmin.f32 %v133, 0.0
  %136 = vrot.lane.b32.xlu0 %v134, 124
  %v137 = vpop.permute.xlu0 %136
  %v139 = vmin.f32 %v54, %v137
  %140 = vrot.lane.b32.xlu0 %v54, 4
  %v141 = vpop.permute.xlu0 %140
  %v143 = vsub.f32 %v133, %v141
  %v144 = vmin.f32 %v143, 0.0
  %146 = vrot.lane.b32.xlu0 %v144, 123
  %v147 = vpop.permute.xlu0 %146
  %v149 = vmin.f32 %v66, %v147
  %150 = vrot.lane.b32.xlu0 %v66, 5
  %v151 = vpop.permute.xlu0 %150
  %v153 = vsub.f32 %v143, %v151
  %v154 = vmin.f32 %v153, 0.0
  %156 = vrot.lane.b32.xlu0 %v154, 122
  %v157 = vpop.permute.xlu0 %156
  %v159 = vmin.f32 %v78, %v157
  %160 = vrot.lane.b32.xlu0 %v78, 6
  %v161 = vpop.permute.xlu0 %160
  %v163 = vsub.f32 %v153, %v161
  %v164 = vmin.f32 %v163, 0.0
  %166 = vrot.lane.b32.xlu0 %v164, 121
  %v167 = vpop.permute.xlu0 %166
  %v169 = vmin.f32 %v90, %v167
  %170 = vrot.lane.b32.xlu0 %v90, 7
  %v171 = vpop.permute.xlu0 %170
  %v173 = vsub.f32 %v163, %v171
  %v174 = vmin.f32 %v173, 0.0
  %176 = vrot.lane.b32.xlu0 %v174, 120
  %v177 = vpop.permute.xlu0 %176
  %v179 = vmin.f32 %v102, %v177
  %v180 = vld [vmem:[%s0] sm:$0xf]
  %182 = vset.pattern.permute.xlu0 0
  %183 = vperm.xlu0 %182, %v179
  %v184 = vpop.permute.xlu0 %183
  %v186 = vmul.f32 %v184, %v180
  %s187 = scalar_lea.vmem %s0, 4
  %v188 = vld [vmem:[%s187] sm:$0xf]
  %190 = vset.pattern.permute.xlu0 1
  %191 = vperm.xlu0 %190, %v169
  %v192 = vpop.permute.xlu0 %191
  %v194 = vmul.f32 %v192, %v188
  %v195 = vadd.f32 %v186, %v194
  %s196 = scalar_lea.vmem %s0, 8
  %v197 = vld [vmem:[%s196] sm:$0xf]
  %199 = vset.pattern.permute.xlu0 2
  %200 = vperm.xlu0 %199, %v159
  %v201 = vpop.permute.xlu0 %200
  %v203 = vmul.f32 %v201, %v197
  %v204 = vadd.f32 %v195, %v203
  %s205 = scalar_lea.vmem %s0, 12
  %v206 = vld [vmem:[%s205] sm:$0xf]
  %208 = vset.pattern.permute.xlu0 3
  %209 = vperm.xlu0 %208, %v149
  %v210 = vpop.permute.xlu0 %209
  %v212 = vmul.f32 %v210, %v206
  %v213 = vadd.f32 %v204, %v212
  %s214 = scalar_lea.vmem %s0, 16
  %v215 = vld [vmem:[%s214] sm:$0xf]
  %217 = vset.pattern.permute.xlu0 4
  %218 = vperm.xlu0 %217, %v139
  %v219 = vpop.permute.xlu0 %218
  %v221 = vmul.f32 %v219, %v215
  %v222 = vadd.f32 %v213, %v221
  %s223 = scalar_lea.vmem %s0, 20
  %v224 = vld [vmem:[%s223] sm:$0xf]
  %226 = vset.pattern.permute.xlu0 5
  %227 = vperm.xlu0 %226, %v129
  %v228 = vpop.permute.xlu0 %227
  %v230 = vmul.f32 %v228, %v224
  %v231 = vadd.f32 %v222, %v230
  %s232 = scalar_lea.vmem %s0, 24
  %v233 = vld [vmem:[%s232] sm:$0xf]
  %235 = vset.pattern.permute.xlu0 6
  %236 = vperm.xlu0 %235, %v119
  %v237 = vpop.permute.xlu0 %236
  %v239 = vmul.f32 %v237, %v233
  %v240 = vadd.f32 %v231, %v239
  %s241 = scalar_lea.vmem %s0, 28
  %v242 = vld [vmem:[%s241] sm:$0xf]
  %244 = vset.pattern.permute.xlu0 7
  %245 = vperm.xlu0 %244, %v109
  %v246 = vpop.permute.xlu0 %245
  %v248 = vmul.f32 %v246, %v242
  %v249 = vadd.f32 %v240, %v248
  %s250 = scalar_lea.vmem %s0, 32
  %v251 = vld [vmem:[%s250] sm:$0xf]
  %252 = vset.pattern.permute.xlu0 8
  %253 = vperm.xlu0 %252, %v12
  %v254 = vpop.permute.xlu0 %253
  %v256 = vmul.f32 %v254, %v251
  %v257 = vadd.f32 %v249, %v256
  %259 = vrot.lane.b32.xlu0 %v257, 9
  %v260 = vpop.permute.xlu0 %259
  %vm262 = vcmask 7168
  %v263 = vsel %vm262, %v102, %v90
  %vm264 = vcmask 15360
  %v265 = vsel %vm264, %v263, %v78
  %vm266 = vcmask 23552
  %v267 = vsel %vm266, %v265, %v66
  %vm268 = vcmask 31744
  %v269 = vsel %vm268, %v267, %v54
  %vm270 = vcmask 39936
  %v271 = vsel %vm270, %v269, %v42
  %vm272 = vcmask 48128
  %v273 = vsel %vm272, %v271, %v30
  %vm274 = vcmask 56320
  %v275 = vsel %vm274, %v273, %v18
  %vm276 = vcmask 64512
  %v277 = vsel %vm276, %v275, %v11
  %vm278 = vcmask 72704
  %v279 = vsel %vm278, %v277, %v260
  %vm280 = vcmask 330752
  %281 = vst.msk [vmem:[%s2] sm:$0xf] %vm280, %v279
  // Predicated region
  $region10: #{nnstack_pallas.1} parent=0 // pred_check
    _
  $region11: #{nnstack_pallas.1} parent=0 // pred_check_branch
    %283 = sbr.rel (0) target = $region13
  $region12: #{nnstack_pallas.1} parent=0 // pred_region
    _
  $region13: #{nnstack_pallas.1} parent=0 // pred_fallthru
    _
  // Predicated region
  $region14: #{nnstack_pallas.1} parent=0 // pred_check
    _
  $region15: #{nnstack_pallas.1} parent=0 // pred_check_branch
    %285 = sbr.rel (0) target = $region17
  $region16: #{nnstack_pallas.1} parent=0 // pred_region
    _
  $region17: #{nnstack_pallas.1} parent=0 // pred_fallthru
    _

</llo_original>
